<compile_context>
chip_gen: v5e
topology: v5e:2x2
jax: 0.10.0
libtpu: 0.0.40
codegen_flags: <defaults>
</compile_context>

<pallas_src>
import functools

import jax
import jax.numpy as jnp
from jax.experimental import pallas as pl
from jax.experimental.pallas import tpu as pltpu

IN_DIM = 63     # PyTorch Linear(63, 512)
HID = 512
OUT_DIM = 3


def ann_kernel(x_ref, w1_ref, b1_ref, w2_ref, b2_ref, w3_ref, b3_ref, o_ref):
    # x: (bt, 63) f32 -> bf16; weights bf16; biases f32; output (bt, 3) f32.
    x = x_ref[...].astype(jnp.bfloat16)
    h = jnp.dot(x, w1_ref[...], preferred_element_type=jnp.float32) + b1_ref[...]
    h = jnp.maximum(h, 0.0).astype(jnp.bfloat16)
    h = jnp.dot(h, w2_ref[...], preferred_element_type=jnp.float32) + b2_ref[...]
    h = jnp.maximum(h, 0.0).astype(jnp.bfloat16)
    o_ref[...] = jnp.dot(h, w3_ref[...], preferred_element_type=jnp.float32) + b3_ref[...]


def _cdiv(a, b):
    return (a + b - 1) // b


def _round_up(n, m):
    return ((n + m - 1) // m) * m


def _choose_tile(B, b_tile):
    """Pick a batch tile: multiple of 16, >= ~4 grid steps when B is large enough
    (so the 'parallel' batch axis can shard across v7x's two TensorCores), and a
    single full-extent block for tiny batches (block dim == B is always legal)."""
    bt = min(b_tile, _round_up(_cdiv(B, 4), 16))
    bt = max(bt, 16)
    if bt >= B:
        return B, 1
    return bt, _cdiv(B, bt)


def prepare_params(params):
    """One-time host-side prep: bf16 weights for the MXU, f32 biases.

    Incoming weights are (in_features, out_features) f32 (already transposed vs.
    torch's storage, so forward is x @ W + b). No shape padding is needed:
    Mosaic handles the K=63 contraction and the N=3 output width directly.
    """
    w1, b1, w2, b2, w3, b3 = params
    return (w1.astype(jnp.bfloat16), b1,
            w2.astype(jnp.bfloat16), b2,
            w3.astype(jnp.bfloat16), b3)


@functools.partial(jax.jit, static_argnames=("b_tile",))
def ann_forward(x, prepared_params, *, b_tile=1024):
    """x: (B, 63) f32.  prepared_params: output of prepare_params.  Returns (B, 3) f32."""
    w1, b1, w2, b2, w3, b3 = prepared_params
    B = x.shape[0]
    bt, n_steps = _choose_tile(B, b_tile)

    # Constant index_map => block is VMEM-resident across all grid steps (DMA'd once).
    resident = lambda arr: pl.BlockSpec(arr.shape, lambda i: (0, 0))

    out = pl.pallas_call(
        ann_kernel,
        out_shape=jax.ShapeDtypeStruct((B, OUT_DIM), jnp.float32),
        grid=(n_steps,),
        in_specs=[
            # x tiled over batch; last dim 63 == full extent (legal block).
            pl.BlockSpec((bt, IN_DIM), lambda i: (i, 0)),
            resident(w1), resident(b1),
            resident(w2), resident(b2),
            resident(w3), resident(b3),
        ],
        # Output exactly (bt, 3): last dim == full extent; OOB rows of a ragged
        # last block are dropped by Pallas, so no wrapper slicing is needed.
        out_specs=pl.BlockSpec((bt, OUT_DIM), lambda i: (i, 0)),
        compiler_params=pltpu.CompilerParams(
            dimension_semantics=("parallel",),   # shard batch tiles across TCs (v7x)
        ),
    )(x, w1, b1, w2, b2, w3, b3)

    return out


def init_params(key):
    """Deterministic init mimicking PyTorch nn.Linear (uniform +/- 1/sqrt(fan_in))."""
    dims = [(IN_DIM, HID), (HID, HID), (HID, OUT_DIM)]
    params = []
    for i, (fan_in, fan_out) in enumerate(dims):
        kw, kb = jax.random.split(jax.random.fold_in(key, i))
        bound = 1.0 / jnp.sqrt(float(fan_in))
        w = jax.random.uniform(kw, (fan_in, fan_out), jnp.float32, -bound, bound)
        b = jax.random.uniform(kb, (1, fan_out), jnp.float32, -bound, bound)
        params += [w, b]
    return tuple(params)


def reference_forward(x, params):
    w1, b1, w2, b2, w3, b3 = params
    h = jnp.maximum(x @ w1 + b1, 0.0)
    h = jnp.maximum(h @ w2 + b2, 0.0)
    return h @ w3 + b3


if __name__ == "__main__":
    key = jax.random.PRNGKey(0)
    params = init_params(key)
    prepared = prepare_params(params)

    # Small-batch check (B=8, matching the module's 63-feature input).
    x_small = jax.random.normal(jax.random.fold_in(key, 100), (8, IN_DIM), jnp.float32)
    out_small = jax.block_until_ready(ann_forward(x_small, prepared))
    ref_small = reference_forward(x_small, params)
    assert out_small.shape == (8, OUT_DIM), out_small.shape
    # bf16 MXU compute vs f32 reference => loosened tolerance.
    assert jnp.allclose(out_small, ref_small, atol=2e-2, rtol=2e-2), "mismatch (B=8)"

    # Non-multiple batch to exercise the multi-step grid + ragged last block.
    x_big = jax.random.normal(jax.random.fold_in(key, 200), (300, IN_DIM), jnp.float32)
    out_big = jax.block_until_ready(ann_forward(x_big, prepared))
    ref_big = reference_forward(x_big, params)
    assert out_big.shape == (300, OUT_DIM), out_big.shape
    assert jnp.allclose(out_big, ref_big, atol=2e-2, rtol=2e-2), "mismatch (B=300)"

    print("KERNEL_OK")
</pallas_src>

<mosaic_0001>
module attributes {stable_mosaic.version = 11 : i64} {
  func.func @ann_kernel(%arg0: i32, %arg1: memref<8x63xf32, #tpu.memory_space<vmem>>, %arg2: memref<63x512xbf16, #tpu.memory_space<vmem>>, %arg3: memref<1x512xf32, #tpu.memory_space<vmem>>, %arg4: memref<512x512xbf16, #tpu.memory_space<vmem>>, %arg5: memref<1x512xf32, #tpu.memory_space<vmem>>, %arg6: memref<512x3xbf16, #tpu.memory_space<vmem>>, %arg7: memref<1x3xf32, #tpu.memory_space<vmem>>, %arg8: memref<8x3xf32, #tpu.memory_space<vmem>>) attributes {dimension_semantics = [#tpu.dimension_semantics<parallel>], iteration_bounds = array<i64: 1>, scalar_prefetch = 0 : i64, scratch_operands = 0 : i64, tpu.core_type = #tpu.core_type<tc>, window_params = [{transform_indices = @transform_0, window_bounds = array<i64: 8, 63>}, {pipeline_mode = #tpu.pipeline_mode<synchronous>, transform_indices = @transform_1, window_bounds = array<i64: 63, 512>}, {pipeline_mode = #tpu.pipeline_mode<synchronous>, transform_indices = @transform_2, window_bounds = array<i64: 1, 512>}, {pipeline_mode = #tpu.pipeline_mode<synchronous>, transform_indices = @transform_3, window_bounds = array<i64: 512, 512>}, {pipeline_mode = #tpu.pipeline_mode<synchronous>, transform_indices = @transform_4, window_bounds = array<i64: 1, 512>}, {pipeline_mode = #tpu.pipeline_mode<synchronous>, transform_indices = @transform_5, window_bounds = array<i64: 512, 3>}, {pipeline_mode = #tpu.pipeline_mode<synchronous>, transform_indices = @transform_6, window_bounds = array<i64: 1, 3>}, {transform_indices = @transform_7, window_bounds = array<i64: 8, 3>}]} {
    %c0 = arith.constant 0 : index
    %c0_0 = arith.constant 0 : index
    %0 = vector.load %arg1[%c0, %c0_0] : memref<8x63xf32, #tpu.memory_space<vmem>>, vector<8x63xf32>
    %1 = arith.truncf %0 : vector<8x63xf32> to vector<8x63xbf16>
    %c0_1 = arith.constant 0 : index
    %c0_2 = arith.constant 0 : index
    %2 = vector.load %arg2[%c0_1, %c0_2] : memref<63x512xbf16, #tpu.memory_space<vmem>>, vector<63x512xbf16>
    %cst = arith.constant dense<0.000000e+00> : vector<8x512xf32>
    %3 = tpu.matmul %1, %2, %cst {dimension_numbers = #tpu.dot_dimension_numbers<[1], [0], [0], [1], [0, 0, 1, 1], [], []>} : vector<8x63xbf16>, vector<63x512xbf16>, vector<8x512xf32> -> vector<8x512xf32>
    %c0_3 = arith.constant 0 : index
    %c0_4 = arith.constant 0 : index
    %4 = vector.load %arg3[%c0_3, %c0_4] : memref<1x512xf32, #tpu.memory_space<vmem>>, vector<1x512xf32>
    %5 = vector.broadcast %4 : vector<1x512xf32> to vector<8x512xf32>
    %6 = arith.addf %3, %5 : vector<8x512xf32>
    %cst_5 = arith.constant 0.000000e+00 : f32
    %7 = vector.broadcast %cst_5 : f32 to vector<8x512xf32>
    %8 = arith.maximumf %6, %7 : vector<8x512xf32>
    %9 = arith.truncf %8 : vector<8x512xf32> to vector<8x512xbf16>
    %c0_6 = arith.constant 0 : index
    %c0_7 = arith.constant 0 : index
    %10 = vector.load %arg4[%c0_6, %c0_7] : memref<512x512xbf16, #tpu.memory_space<vmem>>, vector<512x512xbf16>
    %cst_8 = arith.constant dense<0.000000e+00> : vector<8x512xf32>
    %11 = tpu.matmul %9, %10, %cst_8 {dimension_numbers = #tpu.dot_dimension_numbers<[1], [0], [0], [1], [0, 0, 1, 1], [], []>} : vector<8x512xbf16>, vector<512x512xbf16>, vector<8x512xf32> -> vector<8x512xf32>
    %c0_9 = arith.constant 0 : index
    %c0_10 = arith.constant 0 : index
    %12 = vector.load %arg5[%c0_9, %c0_10] : memref<1x512xf32, #tpu.memory_space<vmem>>, vector<1x512xf32>
    %13 = vector.broadcast %12 : vector<1x512xf32> to vector<8x512xf32>
    %14 = arith.addf %11, %13 : vector<8x512xf32>
    %cst_11 = arith.constant 0.000000e+00 : f32
    %15 = vector.broadcast %cst_11 : f32 to vector<8x512xf32>
    %16 = arith.maximumf %14, %15 : vector<8x512xf32>
    %17 = arith.truncf %16 : vector<8x512xf32> to vector<8x512xbf16>
    %c0_12 = arith.constant 0 : index
    %c0_13 = arith.constant 0 : index
    %18 = vector.load %arg6[%c0_12, %c0_13] : memref<512x3xbf16, #tpu.memory_space<vmem>>, vector<512x3xbf16>
    %cst_14 = arith.constant dense<0.000000e+00> : vector<8x3xf32>
    %19 = tpu.matmul %17, %18, %cst_14 {dimension_numbers = #tpu.dot_dimension_numbers<[1], [0], [0], [1], [0, 0, 1, 1], [], []>} : vector<8x512xbf16>, vector<512x3xbf16>, vector<8x3xf32> -> vector<8x3xf32>
    %c0_15 = arith.constant 0 : index
    %c0_16 = arith.constant 0 : index
    %20 = vector.load %arg7[%c0_15, %c0_16] : memref<1x3xf32, #tpu.memory_space<vmem>>, vector<1x3xf32>
    %21 = vector.broadcast %20 : vector<1x3xf32> to vector<8x3xf32>
    %22 = arith.addf %19, %21 : vector<8x3xf32>
    %c0_17 = arith.constant 0 : index
    %c0_18 = arith.constant 0 : index
    %23 = vector.load %arg8[%c0_17, %c0_18] : memref<8x3xf32, #tpu.memory_space<vmem>>, vector<8x3xf32>
    tpu.vector_store %arg8[%c0_17, %c0_18], %22 {strides = array<i32>} : memref<8x3xf32, #tpu.memory_space<vmem>>, vector<8x3xf32>,
    return
  }
  func.func @transform_0(%arg0: i32) -> (i32, i32) {
    %c0_i32 = arith.constant 0 : i32
    %c0_i32_0 = arith.constant 0 : i32
    return %arg0, %c0_i32 : i32, i32
  }
  func.func @transform_1(%arg0: i32) -> (i32, i32) {
    %c0_i32 = arith.constant 0 : i32
    %c0_i32_0 = arith.constant 0 : i32
    %c0_i32_1 = arith.constant 0 : i32
    return %c0_i32, %c0_i32_0 : i32, i32
  }
  func.func @transform_2(%arg0: i32) -> (i32, i32) {
    %c0_i32 = arith.constant 0 : i32
    %c0_i32_0 = arith.constant 0 : i32
    %c0_i32_1 = arith.constant 0 : i32
    return %c0_i32, %c0_i32_0 : i32, i32
  }
  func.func @transform_3(%arg0: i32) -> (i32, i32) {
    %c0_i32 = arith.constant 0 : i32
    %c0_i32_0 = arith.constant 0 : i32
    %c0_i32_1 = arith.constant 0 : i32
    return %c0_i32, %c0_i32_0 : i32, i32
  }
  func.func @transform_4(%arg0: i32) -> (i32, i32) {
    %c0_i32 = arith.constant 0 : i32
    %c0_i32_0 = arith.constant 0 : i32
    %c0_i32_1 = arith.constant 0 : i32
    return %c0_i32, %c0_i32_0 : i32, i32
  }
  func.func @transform_5(%arg0: i32) -> (i32, i32) {
    %c0_i32 = arith.constant 0 : i32
    %c0_i32_0 = arith.constant 0 : i32
    %c0_i32_1 = arith.constant 0 : i32
    return %c0_i32, %c0_i32_0 : i32, i32
  }
  func.func @transform_6(%arg0: i32) -> (i32, i32) {
    %c0_i32 = arith.constant 0 : i32
    %c0_i32_0 = arith.constant 0 : i32
    %c0_i32_1 = arith.constant 0 : i32
    return %c0_i32, %c0_i32_0 : i32, i32
  }
  func.func @transform_7(%arg0: i32) -> (i32, i32) {
    %c0_i32 = arith.constant 0 : i32
    %c0_i32_0 = arith.constant 0 : i32
    return %arg0, %c0_i32 : i32, i32
  }
}

</mosaic_0001>

<llo_original>
// kernel: ann_forward.1
$region0: #{ann_forward.1}
  #allocation0 [shape = 'u32[]', space=smem, size = 0x4, offset = 0x4, fixed_abs, tag = 'smem constant byte address 0x4 - core index']
  #allocation1 [shape = 'u32[72,128]{1,0:T(1,128)}', space=vmem, size = 0x9000, scoped, tag = 'internal scratch']
  %s0 = inlined_call_operand.vmem [shape: f32[8,63], index: 0, kind: input, shape index: {}]
  %s1 = inlined_call_operand.vmem [shape: bf16[63,512], index: 1, kind: input, shape index: {}]
  %s2 = inlined_call_operand.vmem [shape: f32[1,512], index: 2, kind: input, shape index: {}]
  %s3 = inlined_call_operand.hbm [shape: bf16[512,512], index: 3, kind: input, shape index: {}]
  %s4 = inlined_call_operand.vmem [shape: f32[1,512], index: 4, kind: input, shape index: {}]
  %s5 = inlined_call_operand.vmem [shape: bf16[512,3], index: 5, kind: input, shape index: {}]
  %s6 = inlined_call_operand.vmem [shape: f32[1,3], index: 6, kind: input, shape index: {}]
  %s7 = inlined_call_operand.vmem [shape: f32[8,3], index: 7, kind: output, shape index: {}]
  %s8 = sld [smem:[#allocation0]]
  $region42: #{ann_forward.1} parent=0
    _
  %s10 = ssub.s32 1, %s8
  %s11 = scalar_select 0, %s10, %s8
  $region1: #{ann_forward.1} parent=0
    #allocation2 [shape = 'u8[524288]{0}', space=vmem, size = 0x80000, scoped, tag = 'input window, operand 3, single buffered']
    #allocation3 [shape = 's32[1]{0}', space=sflag, size = 0x4, scoped, tag = 'scoped memory for ann_forward.1']
    %12 = vsyncpa [#allocation3], 0
    // Predicated region
    $region2: #{ann_forward.1} parent=1 // pred_check
      _
    $region3: #{ann_forward.1} parent=1 // pred_check_branch
      %14 = sbr.rel (0) target = $region5
    $region4: #{ann_forward.1} parent=1 // pred_region
      _
    $region5: #{ann_forward.1} parent=1 // pred_fallthru
      _
    // Predicated region
    $region6: #{ann_forward.1} parent=1 // pred_check
      _
    $region7: #{ann_forward.1} parent=1 // pred_check_branch
      %16 = sbr.rel (0) target = $region9
    $region8: #{ann_forward.1} parent=1 // pred_region
      _
    $region9: #{ann_forward.1} parent=1 // pred_fallthru
      _
    // Predicated region
    $region10: #{ann_forward.1} parent=1 // pred_check
      _
    $region11: #{ann_forward.1} parent=1 // pred_check_branch
      %18 = sbr.rel (0) target = $region13
    $region12: #{ann_forward.1} parent=1 // pred_region
      _
    $region13: #{ann_forward.1} parent=1 // pred_fallthru
      _
    // Predicated region
    $region14: #{ann_forward.1} parent=1 // pred_check
      _
    $region15: #{ann_forward.1} parent=1 // pred_check_branch
      %20 = sbr.rel (0) target = $region17
    $region16: #{ann_forward.1} parent=1 // pred_region
      %22 = vsyncadd [#allocation3], 0
      %s23 = sshll.u32 %s3, 4
      %s24 = int_to_ptr.hbm [resolvable:$true] %s23
      %s25 = sshll.u32 [#allocation2], 4
      %s26 = int_to_ptr.vmem [resolvable:$true] %s25
      %31 = dma.hbm_to_vmem [thread:$0]  %s24, 16384, %s26, [#allocation3], 256, 256, 16
    $region17: #{ann_forward.1} parent=1 // pred_fallthru
      _
    // Predicated region
    $region18: #{ann_forward.1} parent=1 // pred_check
      _
    $region19: #{ann_forward.1} parent=1 // pred_check_branch
      %33 = sbr.rel (0) target = $region21
    $region20: #{ann_forward.1} parent=1 // pred_region
      _
    $region21: #{ann_forward.1} parent=1 // pred_fallthru
      _
    // Predicated region
    $region22: #{ann_forward.1} parent=1 // pred_check
      _
    $region23: #{ann_forward.1} parent=1 // pred_check_branch
      %35 = sbr.rel (0) target = $region25
    $region24: #{ann_forward.1} parent=1 // pred_region
      _
    $region25: #{ann_forward.1} parent=1 // pred_fallthru
      _
    // Predicated region
    $region26: #{ann_forward.1} parent=1 // pred_check
      _
    $region27: #{ann_forward.1} parent=1 // pred_check_branch
      %37 = sbr.rel (0) target = $region29
    $region28: #{ann_forward.1} parent=1 // pred_region
      _
    $region29: #{ann_forward.1} parent=1 // pred_fallthru
      _
    // Predicated region
    $region30: #{ann_forward.1} parent=1 // pred_check
      _
    $region31: #{ann_forward.1} parent=1 // pred_check_branch
      %39 = sbr.rel (0) target = $region33
    $region32: #{ann_forward.1} parent=1 // pred_region
      %41 = dma.done [#allocation3], 16384
    $region33: #{ann_forward.1} parent=1 // pred_fallthru
      _
    %v43 = vld [vmem:[%s0] sm:$0xff]
    %v44 = vpack.c.bf16 %v43, %v43
    %v45 = vld [vmem:[%s1] sm:$0xff]
    %v46 = vld [vmem:[%s1 + $0x8] sm:$0xff]
    %v47 = vld [vmem:[%s1 + $0x10] sm:$0xff]
    %v48 = vld [vmem:[%s1 + $0x18] sm:$0xff]
    %v49 = vld [vmem:[%s1 + $0x20] sm:$0xff]
    %v50 = vld [vmem:[%s1 + $0x28] sm:$0xff]
    %v51 = vld [vmem:[%s1 + $0x30] sm:$0xff]
    %v52 = vld [vmem:[%s1 + $0x38] sm:$0xff]
    %v53 = vld [vmem:[%s1 + $0x40] sm:$0xff]
    %v54 = vld [vmem:[%s1 + $0x48] sm:$0xff]
    %v55 = vld [vmem:[%s1 + $0x50] sm:$0xff]
    %v56 = vld [vmem:[%s1 + $0x58] sm:$0xff]
    %v57 = vld [vmem:[%s1 + $0x60] sm:$0xff]
    %v58 = vld [vmem:[%s1 + $0x68] sm:$0xff]
    %v59 = vld [vmem:[%s1 + $0x70] sm:$0xff]
    %v60 = vld [vmem:[%s1 + $0x78] sm:$0xff]
    %v61 = vld [vmem:[%s2] sm:$0xf]
    %v63 = vperm.slane %v61, 0
    %v64 = vperm.slane %v61, 1
    %v65 = vperm.slane %v61, 2
    %v66 = vperm.slane %v61, 3
    %v87 = vunpack.c.l.b16 %v45
    %v88 = vunpack.c.h.b16 %v45
    %v89 = vunpack.c.l.b16 %v46
    %v90 = vunpack.c.h.b16 %v46
    %v91 = vunpack.c.l.b16 %v47
    %v92 = vunpack.c.h.b16 %v47
    %v93 = vunpack.c.l.b16 %v48
    %v94 = vunpack.c.h.b16 %v48
    %v95 = vunpack.c.l.b16 %v49
    %v96 = vunpack.c.h.b16 %v49
    %v97 = vunpack.c.l.b16 %v50
    %v98 = vunpack.c.h.b16 %v50
    %v99 = vunpack.c.l.b16 %v51
    %v100 = vunpack.c.h.b16 %v51
    %v101 = vunpack.c.l.b16 %v52
    %v102 = vunpack.c.h.b16 %v52
    %v103 = vunpack.c.l.b16 %v53
    %v104 = vunpack.c.h.b16 %v53
    %v105 = vunpack.c.l.b16 %v54
    %v106 = vunpack.c.h.b16 %v54
    %v107 = vunpack.c.l.b16 %v55
    %v108 = vunpack.c.h.b16 %v55
    %v109 = vunpack.c.l.b16 %v56
    %v110 = vunpack.c.h.b16 %v56
    %v111 = vunpack.c.l.b16 %v57
    %v112 = vunpack.c.h.b16 %v57
    %v113 = vunpack.c.l.b16 %v58
    %v114 = vunpack.c.h.b16 %v58
    %v115 = vunpack.c.l.b16 %v59
    %v116 = vunpack.c.h.b16 %v59
    %v117 = vunpack.c.l.b16 %v60
    %v118 = vunpack.c.h.b16 %v60
    %v119 = vpack.c.b16 %v91, %v87
    %v120 = vpack.c.b16 %v92, %v88
    %v121 = vpack.c.b16 %v93, %v89
    %v122 = vpack.c.b16 %v94, %v90
    %v123 = vpack.c.b16 %v99, %v95
    %v124 = vpack.c.b16 %v100, %v96
    %v125 = vpack.c.b16 %v101, %v97
    %v126 = vpack.c.b16 %v102, %v98
    %v127 = vpack.c.b16 %v107, %v103
    %v128 = vpack.c.b16 %v108, %v104
    %v129 = vpack.c.b16 %v109, %v105
    %v130 = vpack.c.b16 %v110, %v106
    %v131 = vpack.c.b16 %v115, %v111
    %v132 = vpack.c.b16 %v116, %v112
    %v133 = vpack.c.b16 %v117, %v113
    %v134 = vpack.c.b16 %v118, %v114
    %vm147 = vcmask 515072
    %v149 = vsel %vm147, %v44, 0
    %vm151 = vcmask 1046528
    %vm152 = vcmask 1047552
    %v153 = vsel %vm151, 4294967295, 65535
    %v154 = vsel %vm152, %v153, 0
    %v156 = vand.u32 %v131, %v154
    %v159 = vand.u32 %v132, %v154
    %v162 = vand.u32 %v133, %v154
    %v165 = vand.u32 %v134, %v154
    %167 = vmatpush.bf16.msra.mxu0 0
    %168 = vmatpush.bf16.msra.mxu0 0
    %169 = vmatpush.bf16.msra.mxu0 0
    %170 = vmatpush.bf16.msra.mxu0 0
    %171 = vmatpush.bf16.msra.mxu0 %v156
    %172 = vmatpush.bf16.msra.mxu0 %v127
    %173 = vmatpush.bf16.msra.mxu0 %v123
    %174 = vmatpush.bf16.msra.mxu0 %v119
    %175 = vmatmul.bf16.gmra.mxu0 %v149
    %v176 = vpop.f32.mrf.mxu0
    %v177 = vadd.f32 %v63, %v176
    %v178 = vpop.f32.mrf.mxu0
    %179 = vdwg.mxu0
    %180 = vmatpush.bf16.msra.mxu0 0
    %181 = vmatpush.bf16.msra.mxu0 0
    %182 = vmatpush.bf16.msra.mxu0 0
    %183 = vmatpush.bf16.msra.mxu0 0
    %184 = vmatpush.bf16.msra.mxu0 %v159
    %185 = vmatpush.bf16.msra.mxu0 %v128
    %186 = vmatpush.bf16.msra.mxu0 %v124
    %187 = vmatpush.bf16.msra.mxu0 %v120
    %188 = vmatmul.bf16.gmra.mxu0 %v149
    %v189 = vpop.f32.mrf.mxu0
    %v190 = vadd.f32 %v64, %v189
    %v191 = vpop.f32.mrf.mxu0
    %192 = vdwg.mxu0
    %193 = vmatpush.bf16.msra.mxu0 0
    %194 = vmatpush.bf16.msra.mxu0 0
    %195 = vmatpush.bf16.msra.mxu0 0
    %196 = vmatpush.bf16.msra.mxu0 0
    %197 = vmatpush.bf16.msra.mxu0 %v162
    %198 = vmatpush.bf16.msra.mxu0 %v129
    %199 = vmatpush.bf16.msra.mxu0 %v125
    %200 = vmatpush.bf16.msra.mxu0 %v121
    %201 = vmatmul.bf16.gmra.mxu0 %v149
    %v202 = vpop.f32.mrf.mxu0
    %v203 = vadd.f32 %v65, %v202
    %v204 = vpop.f32.mrf.mxu0
    %205 = vdwg.mxu0
    %206 = vmatpush.bf16.msra.mxu0 0
    %207 = vmatpush.bf16.msra.mxu0 0
    %208 = vmatpush.bf16.msra.mxu0 0
    %209 = vmatpush.bf16.msra.mxu0 0
    %210 = vmatpush.bf16.msra.mxu0 %v165
    %211 = vmatpush.bf16.msra.mxu0 %v130
    %212 = vmatpush.bf16.msra.mxu0 %v126
    %213 = vmatpush.bf16.msra.mxu0 %v122
    %214 = vmatmul.bf16.gmra.mxu0 %v149
    %v215 = vpop.f32.mrf.mxu0
    %v216 = vadd.f32 %v66, %v215
    %v217 = vpop.f32.mrf.mxu0
    %218 = vdwg.mxu0
    %v219 = vmax.f32 %v177, 0.0
    %v220 = vmax.f32 %v190, 0.0
    %v221 = vmax.f32 %v203, 0.0
    %v222 = vmax.f32 %v216, 0.0
    %v223 = vpack.c.bf16 %v219, %v219
    %v224 = vpack.c.bf16 %v220, %v220
    %v225 = vpack.c.bf16 %v221, %v221
    %v226 = vpack.c.bf16 %v222, %v222
    %v227 = vld [vmem:[#allocation2] sm:$0xff]
    %v228 = vld [vmem:[#allocation2 + $0x8] sm:$0xff]
    %v229 = vld [vmem:[#allocation2 + $0x10] sm:$0xff]
    %v230 = vld [vmem:[#allocation2 + $0x18] sm:$0xff]
    %v231 = vld [vmem:[#allocation2 + $0x20] sm:$0xff]
    %v232 = vld [vmem:[#allocation2 + $0x28] sm:$0xff]
    %v233 = vld [vmem:[#allocation2 + $0x30] sm:$0xff]
    %v234 = vld [vmem:[#allocation2 + $0x38] sm:$0xff]
    %v235 = vld [vmem:[#allocation2 + $0x40] sm:$0xff]
    %v236 = vld [vmem:[#allocation2 + $0x48] sm:$0xff]
    %v237 = vld [vmem:[#allocation2 + $0x50] sm:$0xff]
    %v238 = vld [vmem:[#allocation2 + $0x58] sm:$0xff]
    %v239 = vld [vmem:[#allocation2 + $0x60] sm:$0xff]
    %v240 = vld [vmem:[#allocation2 + $0x68] sm:$0xff]
    %v241 = vld [vmem:[#allocation2 + $0x70] sm:$0xff]
    %v242 = vld [vmem:[#allocation2 + $0x78] sm:$0xff]
    %v243 = vld [vmem:[#allocation2 + $0x80] sm:$0xff]
    %v244 = vld [vmem:[#allocation2 + $0x88] sm:$0xff]
    %v245 = vld [vmem:[#allocation2 + $0x90] sm:$0xff]
    %v246 = vld [vmem:[#allocation2 + $0x98] sm:$0xff]
    %v247 = vld [vmem:[#allocation2 + $0xa0] sm:$0xff]
    %v248 = vld [vmem:[#allocation2 + $0xa8] sm:$0xff]
    %v249 = vld [vmem:[#allocation2 + $0xb0] sm:$0xff]
    %v250 = vld [vmem:[#allocation2 + $0xb8] sm:$0xff]
    %v251 = vld [vmem:[#allocation2 + $0xc0] sm:$0xff]
    %v252 = vld [vmem:[#allocation2 + $0xc8] sm:$0xff]
    %v253 = vld [vmem:[#allocation2 + $0xd0] sm:$0xff]
    %v254 = vld [vmem:[#allocation2 + $0xd8] sm:$0xff]
    %v255 = vld [vmem:[#allocation2 + $0xe0] sm:$0xff]
    %v256 = vld [vmem:[#allocation2 + $0xe8] sm:$0xff]
    %v257 = vld [vmem:[#allocation2 + $0xf0] sm:$0xff]
    %v258 = vld [vmem:[#allocation2 + $0xf8] sm:$0xff]
    %v259 = vld [vmem:[#allocation2 + $0x100] sm:$0xff]
    %v260 = vld [vmem:[#allocation2 + $0x108] sm:$0xff]
    %v261 = vld [vmem:[#allocation2 + $0x110] sm:$0xff]
    %v262 = vld [vmem:[#allocation2 + $0x118] sm:$0xff]
    %v263 = vld [vmem:[#allocation2 + $0x120] sm:$0xff]
    %v264 = vld [vmem:[#allocation2 + $0x128] sm:$0xff]
    %v265 = vld [vmem:[#allocation2 + $0x130] sm:$0xff]
    %v266 = vld [vmem:[#allocation2 + $0x138] sm:$0xff]
    %v267 = vld [vmem:[#allocation2 + $0x140] sm:$0xff]
    %v268 = vld [vmem:[#allocation2 + $0x148] sm:$0xff]
    %v269 = vld [vmem:[#allocation2 + $0x150] sm:$0xff]
    %v270 = vld [vmem:[#allocation2 + $0x158] sm:$0xff]
    %v271 = vld [vmem:[#allocation2 + $0x160] sm:$0xff]
    %v272 = vld [vmem:[#allocation2 + $0x168] sm:$0xff]
    %v273 = vld [vmem:[#allocation2 + $0x170] sm:$0xff]
    %v274 = vld [vmem:[#allocation2 + $0x178] sm:$0xff]
    %v275 = vld [vmem:[#allocation2 + $0x180] sm:$0xff]
    %v276 = vld [vmem:[#allocation2 + $0x188] sm:$0xff]
    %v277 = vld [vmem:[#allocation2 + $0x190] sm:$0xff]
    %v278 = vld [vmem:[#allocation2 + $0x198] sm:$0xff]
    %v279 = vld [vmem:[#allocation2 + $0x1a0] sm:$0xff]
    %v280 = vld [vmem:[#allocation2 + $0x1a8] sm:$0xff]
    %v281 = vld [vmem:[#allocation2 + $0x1b0] sm:$0xff]
    %v282 = vld [vmem:[#allocation2 + $0x1b8] sm:$0xff]
    %v283 = vld [vmem:[#allocation2 + $0x1c0] sm:$0xff]
    %v284 = vld [vmem:[#allocation2 + $0x1c8] sm:$0xff]
    %v285 = vld [vmem:[#allocation2 + $0x1d0] sm:$0xff]
    %v286 = vld [vmem:[#allocation2 + $0x1d8] sm:$0xff]
    %v287 = vld [vmem:[#allocation2 + $0x1e0] sm:$0xff]
    %v288 = vld [vmem:[#allocation2 + $0x1e8] sm:$0xff]
    %v289 = vld [vmem:[#allocation2 + $0x1f0] sm:$0xff]
    %v290 = vld [vmem:[#allocation2 + $0x1f8] sm:$0xff]
    %v291 = vld [vmem:[#allocation2 + $0x200] sm:$0xff]
    %v292 = vld [vmem:[#allocation2 + $0x208] sm:$0xff]
    %v293 = vld [vmem:[#allocation2 + $0x210] sm:$0xff]
    %v294 = vld [vmem:[#allocation2 + $0x218] sm:$0xff]
    %v295 = vld [vmem:[#allocation2 + $0x220] sm:$0xff]
    %v296 = vld [vmem:[#allocation2 + $0x228] sm:$0xff]
    %v297 = vld [vmem:[#allocation2 + $0x230] sm:$0xff]
    %v298 = vld [vmem:[#allocation2 + $0x238] sm:$0xff]
    %v299 = vld [vmem:[#allocation2 + $0x240] sm:$0xff]
    %v300 = vld [vmem:[#allocation2 + $0x248] sm:$0xff]
    %v301 = vld [vmem:[#allocation2 + $0x250] sm:$0xff]
    %v302 = vld [vmem:[#allocation2 + $0x258] sm:$0xff]
    %v303 = vld [vmem:[#allocation2 + $0x260] sm:$0xff]
    %v304 = vld [vmem:[#allocation2 + $0x268] sm:$0xff]
    %v305 = vld [vmem:[#allocation2 + $0x270] sm:$0xff]
    %v306 = vld [vmem:[#allocation2 + $0x278] sm:$0xff]
    %v307 = vld [vmem:[#allocation2 + $0x280] sm:$0xff]
    %v308 = vld [vmem:[#allocation2 + $0x288] sm:$0xff]
    %v309 = vld [vmem:[#allocation2 + $0x290] sm:$0xff]
    %v310 = vld [vmem:[#allocation2 + $0x298] sm:$0xff]
    %v311 = vld [vmem:[#allocation2 + $0x2a0] sm:$0xff]
    %v312 = vld [vmem:[#allocation2 + $0x2a8] sm:$0xff]
    %v313 = vld [vmem:[#allocation2 + $0x2b0] sm:$0xff]
    %v314 = vld [vmem:[#allocation2 + $0x2b8] sm:$0xff]
    %v315 = vld [vmem:[#allocation2 + $0x2c0] sm:$0xff]
    %v316 = vld [vmem:[#allocation2 + $0x2c8] sm:$0xff]
    %v317 = vld [vmem:[#allocation2 + $0x2d0] sm:$0xff]
    %v318 = vld [vmem:[#allocation2 + $0x2d8] sm:$0xff]
    %v319 = vld [vmem:[#allocation2 + $0x2e0] sm:$0xff]
    %v320 = vld [vmem:[#allocation2 + $0x2e8] sm:$0xff]
    %v321 = vld [vmem:[#allocation2 + $0x2f0] sm:$0xff]
    %v322 = vld [vmem:[#allocation2 + $0x2f8] sm:$0xff]
    %v323 = vld [vmem:[#allocation2 + $0x300] sm:$0xff]
    %v324 = vld [vmem:[#allocation2 + $0x308] sm:$0xff]
    %v325 = vld [vmem:[#allocation2 + $0x310] sm:$0xff]
    %v326 = vld [vmem:[#allocation2 + $0x318] sm:$0xff]
    %v327 = vld [vmem:[#allocation2 + $0x320] sm:$0xff]
    %v328 = vld [vmem:[#allocation2 + $0x328] sm:$0xff]
    %v329 = vld [vmem:[#allocation2 + $0x330] sm:$0xff]
    %v330 = vld [vmem:[#allocation2 + $0x338] sm:$0xff]
    %v331 = vld [vmem:[#allocation2 + $0x340] sm:$0xff]
    %v332 = vld [vmem:[#allocation2 + $0x348] sm:$0xff]
    %v333 = vld [vmem:[#allocation2 + $0x350] sm:$0xff]
    %v334 = vld [vmem:[#allocation2 + $0x358] sm:$0xff]
    %v335 = vld [vmem:[#allocation2 + $0x360] sm:$0xff]
    %v336 = vld [vmem:[#allocation2 + $0x368] sm:$0xff]
    %v337 = vld [vmem:[#allocation2 + $0x370] sm:$0xff]
    %v338 = vld [vmem:[#allocation2 + $0x378] sm:$0xff]
    %v339 = vld [vmem:[#allocation2 + $0x380] sm:$0xff]
    %v340 = vld [vmem:[#allocation2 + $0x388] sm:$0xff]
    %v341 = vld [vmem:[#allocation2 + $0x390] sm:$0xff]
    %v342 = vld [vmem:[#allocation2 + $0x398] sm:$0xff]
    %v343 = vld [vmem:[#allocation2 + $0x3a0] sm:$0xff]
    %v344 = vld [vmem:[#allocation2 + $0x3a8] sm:$0xff]
    %v345 = vld [vmem:[#allocation2 + $0x3b0] sm:$0xff]
    %v346 = vld [vmem:[#allocation2 + $0x3b8] sm:$0xff]
    %v347 = vld [vmem:[#allocation2 + $0x3c0] sm:$0xff]
    %v348 = vld [vmem:[#allocation2 + $0x3c8] sm:$0xff]
    %v349 = vld [vmem:[#allocation2 + $0x3d0] sm:$0xff]
    %v350 = vld [vmem:[#allocation2 + $0x3d8] sm:$0xff]
    %v351 = vld [vmem:[#allocation2 + $0x3e0] sm:$0xff]
    %v352 = vld [vmem:[#allocation2 + $0x3e8] sm:$0xff]
    %v353 = vld [vmem:[#allocation2 + $0x3f0] sm:$0xff]
    %v354 = vld [vmem:[#allocation2 + $0x3f8] sm:$0xff]
    %v355 = vld [vmem:[%s4] sm:$0xf]
    %v357 = vperm.slane %v355, 0
    %v358 = vperm.slane %v355, 1
    %v359 = vperm.slane %v355, 2
    %v360 = vperm.slane %v355, 3
    %v493 = vunpack.c.l.b16 %v227
    %v494 = vunpack.c.h.b16 %v227
    %v495 = vunpack.c.l.b16 %v228
    %v496 = vunpack.c.h.b16 %v228
    %v497 = vunpack.c.l.b16 %v229
    %v498 = vunpack.c.h.b16 %v229
    %v499 = vunpack.c.l.b16 %v230
    %v500 = vunpack.c.h.b16 %v230
    %v501 = vunpack.c.l.b16 %v231
    %v502 = vunpack.c.h.b16 %v231
    %v503 = vunpack.c.l.b16 %v232
    %v504 = vunpack.c.h.b16 %v232
    %v505 = vunpack.c.l.b16 %v233
    %v506 = vunpack.c.h.b16 %v233
    %v507 = vunpack.c.l.b16 %v234
    %v508 = vunpack.c.h.b16 %v234
    %v509 = vunpack.c.l.b16 %v235
    %v510 = vunpack.c.h.b16 %v235
    %v511 = vunpack.c.l.b16 %v236
    %v512 = vunpack.c.h.b16 %v236
    %v513 = vunpack.c.l.b16 %v237
    %v514 = vunpack.c.h.b16 %v237
    %v515 = vunpack.c.l.b16 %v238
    %v516 = vunpack.c.h.b16 %v238
    %v517 = vunpack.c.l.b16 %v239
    %v518 = vunpack.c.h.b16 %v239
    %v519 = vunpack.c.l.b16 %v240
    %v520 = vunpack.c.h.b16 %v240
    %v521 = vunpack.c.l.b16 %v241
    %v522 = vunpack.c.h.b16 %v241
    %v523 = vunpack.c.l.b16 %v242
    %v524 = vunpack.c.h.b16 %v242
    %v525 = vunpack.c.l.b16 %v243
    %v526 = vunpack.c.h.b16 %v243
    %v527 = vunpack.c.l.b16 %v244
    %v528 = vunpack.c.h.b16 %v244
    %v529 = vunpack.c.l.b16 %v245
    %v530 = vunpack.c.h.b16 %v245
    %v531 = vunpack.c.l.b16 %v246
    %v532 = vunpack.c.h.b16 %v246
    %v533 = vunpack.c.l.b16 %v247
    %v534 = vunpack.c.h.b16 %v247
    %v535 = vunpack.c.l.b16 %v248
    %v536 = vunpack.c.h.b16 %v248
    %v537 = vunpack.c.l.b16 %v249
    %v538 = vunpack.c.h.b16 %v249
    %v539 = vunpack.c.l.b16 %v250
    %v540 = vunpack.c.h.b16 %v250
    %v541 = vunpack.c.l.b16 %v251
    %v542 = vunpack.c.h.b16 %v251
    %v543 = vunpack.c.l.b16 %v252
    %v544 = vunpack.c.h.b16 %v252
    %v545 = vunpack.c.l.b16 %v253
    %v546 = vunpack.c.h.b16 %v253
    %v547 = vunpack.c.l.b16 %v254
    %v548 = vunpack.c.h.b16 %v254
    %v549 = vunpack.c.l.b16 %v255
    %v550 = vunpack.c.h.b16 %v255
    %v551 = vunpack.c.l.b16 %v256
    %v552 = vunpack.c.h.b16 %v256
    %v553 = vunpack.c.l.b16 %v257
    %v554 = vunpack.c.h.b16 %v257
    %v555 = vunpack.c.l.b16 %v258
    %v556 = vunpack.c.h.b16 %v258
    %v557 = vunpack.c.l.b16 %v259
    %v558 = vunpack.c.h.b16 %v259
    %v559 = vunpack.c.l.b16 %v260
    %v560 = vunpack.c.h.b16 %v260
    %v561 = vunpack.c.l.b16 %v261
    %v562 = vunpack.c.h.b16 %v261
    %v563 = vunpack.c.l.b16 %v262
    %v564 = vunpack.c.h.b16 %v262
    %v565 = vunpack.c.l.b16 %v263
    %v566 = vunpack.c.h.b16 %v263
    %v567 = vunpack.c.l.b16 %v264
    %v568 = vunpack.c.h.b16 %v264
    %v569 = vunpack.c.l.b16 %v265
    %v570 = vunpack.c.h.b16 %v265
    %v571 = vunpack.c.l.b16 %v266
    %v572 = vunpack.c.h.b16 %v266
    %v573 = vunpack.c.l.b16 %v267
    %v574 = vunpack.c.h.b16 %v267
    %v575 = vunpack.c.l.b16 %v268
    %v576 = vunpack.c.h.b16 %v268
    %v577 = vunpack.c.l.b16 %v269
    %v578 = vunpack.c.h.b16 %v269
    %v579 = vunpack.c.l.b16 %v270
    %v580 = vunpack.c.h.b16 %v270
    %v581 = vunpack.c.l.b16 %v271
    %v582 = vunpack.c.h.b16 %v271
    %v583 = vunpack.c.l.b16 %v272
    %v584 = vunpack.c.h.b16 %v272
    %v585 = vunpack.c.l.b16 %v273
    %v586 = vunpack.c.h.b16 %v273
    %v587 = vunpack.c.l.b16 %v274
    %v588 = vunpack.c.h.b16 %v274
    %v589 = vunpack.c.l.b16 %v275
    %v590 = vunpack.c.h.b16 %v275
    %v591 = vunpack.c.l.b16 %v276
    %v592 = vunpack.c.h.b16 %v276
    %v593 = vunpack.c.l.b16 %v277
    %v594 = vunpack.c.h.b16 %v277
    %v595 = vunpack.c.l.b16 %v278
    %v596 = vunpack.c.h.b16 %v278
    %v597 = vunpack.c.l.b16 %v279
    %v598 = vunpack.c.h.b16 %v279
    %v599 = vunpack.c.l.b16 %v280
    %v600 = vunpack.c.h.b16 %v280
    %v601 = vunpack.c.l.b16 %v281
    %v602 = vunpack.c.h.b16 %v281
    %v603 = vunpack.c.l.b16 %v282
    %v604 = vunpack.c.h.b16 %v282
    %v605 = vunpack.c.l.b16 %v283
    %v606 = vunpack.c.h.b16 %v283
    %v607 = vunpack.c.l.b16 %v284
    %v608 = vunpack.c.h.b16 %v284
    %v609 = vunpack.c.l.b16 %v285
    %v610 = vunpack.c.h.b16 %v285
    %v611 = vunpack.c.l.b16 %v286
    %v612 = vunpack.c.h.b16 %v286
    %v613 = vunpack.c.l.b16 %v287
    %v614 = vunpack.c.h.b16 %v287
    %v615 = vunpack.c.l.b16 %v288
    %v616 = vunpack.c.h.b16 %v288
    %v617 = vunpack.c.l.b16 %v289
    %v618 = vunpack.c.h.b16 %v289
    %v619 = vunpack.c.l.b16 %v290
    %v620 = vunpack.c.h.b16 %v290
    %v621 = vunpack.c.l.b16 %v291
    %v622 = vunpack.c.h.b16 %v291
    %v623 = vunpack.c.l.b16 %v292
    %v624 = vunpack.c.h.b16 %v292
    %v625 = vunpack.c.l.b16 %v293
    %v626 = vunpack.c.h.b16 %v293
    %v627 = vunpack.c.l.b16 %v294
    %v628 = vunpack.c.h.b16 %v294
    %v629 = vunpack.c.l.b16 %v295
    %v630 = vunpack.c.h.b16 %v295
    %v631 = vunpack.c.l.b16 %v296
    %v632 = vunpack.c.h.b16 %v296
    %v633 = vunpack.c.l.b16 %v297
    %v634 = vunpack.c.h.b16 %v297
    %v635 = vunpack.c.l.b16 %v298
    %v636 = vunpack.c.h.b16 %v298
    %v637 = vunpack.c.l.b16 %v299
    %v638 = vunpack.c.h.b16 %v299
    %v639 = vunpack.c.l.b16 %v300
    %v640 = vunpack.c.h.b16 %v300
    %v641 = vunpack.c.l.b16 %v301
    %v642 = vunpack.c.h.b16 %v301
    %v643 = vunpack.c.l.b16 %v302
    %v644 = vunpack.c.h.b16 %v302
    %v645 = vunpack.c.l.b16 %v303
    %v646 = vunpack.c.h.b16 %v303
    %v647 = vunpack.c.l.b16 %v304
    %v648 = vunpack.c.h.b16 %v304
    %v649 = vunpack.c.l.b16 %v305
    %v650 = vunpack.c.h.b16 %v305
    %v651 = vunpack.c.l.b16 %v306
    %v652 = vunpack.c.h.b16 %v306
    %v653 = vunpack.c.l.b16 %v307
    %v654 = vunpack.c.h.b16 %v307
    %v655 = vunpack.c.l.b16 %v308
    %v656 = vunpack.c.h.b16 %v308
    %v657 = vunpack.c.l.b16 %v309
    %v658 = vunpack.c.h.b16 %v309
    %v659 = vunpack.c.l.b16 %v310
    %v660 = vunpack.c.h.b16 %v310
    %v661 = vunpack.c.l.b16 %v311
    %v662 = vunpack.c.h.b16 %v311
    %v663 = vunpack.c.l.b16 %v312
    %v664 = vunpack.c.h.b16 %v312
    %v665 = vunpack.c.l.b16 %v313
    %v666 = vunpack.c.h.b16 %v313
    %v667 = vunpack.c.l.b16 %v314
    %v668 = vunpack.c.h.b16 %v314
    %v669 = vunpack.c.l.b16 %v315
    %v670 = vunpack.c.h.b16 %v315
    %v671 = vunpack.c.l.b16 %v316
    %v672 = vunpack.c.h.b16 %v316
    %v673 = vunpack.c.l.b16 %v317
    %v674 = vunpack.c.h.b16 %v317
    %v675 = vunpack.c.l.b16 %v318
    %v676 = vunpack.c.h.b16 %v318
    %v677 = vunpack.c.l.b16 %v319
    %v678 = vunpack.c.h.b16 %v319
    %v679 = vunpack.c.l.b16 %v320
    %v680 = vunpack.c.h.b16 %v320
    %v681 = vunpack.c.l.b16 %v321
    %v682 = vunpack.c.h.b16 %v321
    %v683 = vunpack.c.l.b16 %v322
    %v684 = vunpack.c.h.b16 %v322
    %v685 = vunpack.c.l.b16 %v323
    %v686 = vunpack.c.h.b16 %v323
    %v687 = vunpack.c.l.b16 %v324
    %v688 = vunpack.c.h.b16 %v324
    %v689 = vunpack.c.l.b16 %v325
    %v690 = vunpack.c.h.b16 %v325
    %v691 = vunpack.c.l.b16 %v326
    %v692 = vunpack.c.h.b16 %v326
    %v693 = vunpack.c.l.b16 %v327
    %v694 = vunpack.c.h.b16 %v327
    %v695 = vunpack.c.l.b16 %v328
    %v696 = vunpack.c.h.b16 %v328
    %v697 = vunpack.c.l.b16 %v329
    %v698 = vunpack.c.h.b16 %v329
    %v699 = vunpack.c.l.b16 %v330
    %v700 = vunpack.c.h.b16 %v330
    %v701 = vunpack.c.l.b16 %v331
    %v702 = vunpack.c.h.b16 %v331
    %v703 = vunpack.c.l.b16 %v332
    %v704 = vunpack.c.h.b16 %v332
    %v705 = vunpack.c.l.b16 %v333
    %v706 = vunpack.c.h.b16 %v333
    %v707 = vunpack.c.l.b16 %v334
    %v708 = vunpack.c.h.b16 %v334
    %v709 = vunpack.c.l.b16 %v335
    %v710 = vunpack.c.h.b16 %v335
    %v711 = vunpack.c.l.b16 %v336
    %v712 = vunpack.c.h.b16 %v336
    %v713 = vunpack.c.l.b16 %v337
    %v714 = vunpack.c.h.b16 %v337
    %v715 = vunpack.c.l.b16 %v338
    %v716 = vunpack.c.h.b16 %v338
    %v717 = vunpack.c.l.b16 %v339
    %v718 = vunpack.c.h.b16 %v339
    %v719 = vunpack.c.l.b16 %v340
    %v720 = vunpack.c.h.b16 %v340
    %v721 = vunpack.c.l.b16 %v341
    %v722 = vunpack.c.h.b16 %v341
    %v723 = vunpack.c.l.b16 %v342
    %v724 = vunpack.c.h.b16 %v342
    %v725 = vunpack.c.l.b16 %v343
    %v726 = vunpack.c.h.b16 %v343
    %v727 = vunpack.c.l.b16 %v344
    %v728 = vunpack.c.h.b16 %v344
    %v729 = vunpack.c.l.b16 %v345
    %v730 = vunpack.c.h.b16 %v345
    %v731 = vunpack.c.l.b16 %v346
    %v732 = vunpack.c.h.b16 %v346
    %v733 = vunpack.c.l.b16 %v347
    %v734 = vunpack.c.h.b16 %v347
    %v735 = vunpack.c.l.b16 %v348
    %v736 = vunpack.c.h.b16 %v348
    %v737 = vunpack.c.l.b16 %v349
    %v738 = vunpack.c.h.b16 %v349
    %v739 = vunpack.c.l.b16 %v350
    %v740 = vunpack.c.h.b16 %v350
    %v741 = vunpack.c.l.b16 %v351
    %v742 = vunpack.c.h.b16 %v351
    %v743 = vunpack.c.l.b16 %v352
    %v744 = vunpack.c.h.b16 %v352
    %v745 = vunpack.c.l.b16 %v353
    %v746 = vunpack.c.h.b16 %v353
    %v747 = vunpack.c.l.b16 %v354
    %v748 = vunpack.c.h.b16 %v354
    %v749 = vpack.c.b16 %v497, %v493
    %v750 = vpack.c.b16 %v498, %v494
    %v751 = vpack.c.b16 %v499, %v495
    %v752 = vpack.c.b16 %v500, %v496
    %v753 = vpack.c.b16 %v505, %v501
    %v754 = vpack.c.b16 %v506, %v502
    %v755 = vpack.c.b16 %v507, %v503
    %v756 = vpack.c.b16 %v508, %v504
    %v757 = vpack.c.b16 %v513, %v509
    %v758 = vpack.c.b16 %v514, %v510
    %v759 = vpack.c.b16 %v515, %v511
    %v760 = vpack.c.b16 %v516, %v512
    %v761 = vpack.c.b16 %v521, %v517
    %v762 = vpack.c.b16 %v522, %v518
    %v763 = vpack.c.b16 %v523, %v519
    %v764 = vpack.c.b16 %v524, %v520
    %v765 = vpack.c.b16 %v529, %v525
    %v766 = vpack.c.b16 %v530, %v526
    %v767 = vpack.c.b16 %v531, %v527
    %v768 = vpack.c.b16 %v532, %v528
    %v769 = vpack.c.b16 %v537, %v533
    %v770 = vpack.c.b16 %v538, %v534
    %v771 = vpack.c.b16 %v539, %v535
    %v772 = vpack.c.b16 %v540, %v536
    %v773 = vpack.c.b16 %v545, %v541
    %v774 = vpack.c.b16 %v546, %v542
    %v775 = vpack.c.b16 %v547, %v543
    %v776 = vpack.c.b16 %v548, %v544
    %v777 = vpack.c.b16 %v553, %v549
    %v778 = vpack.c.b16 %v554, %v550
    %v779 = vpack.c.b16 %v555, %v551
    %v780 = vpack.c.b16 %v556, %v552
    %v781 = vpack.c.b16 %v561, %v557
    %v782 = vpack.c.b16 %v562, %v558
    %v783 = vpack.c.b16 %v563, %v559
    %v784 = vpack.c.b16 %v564, %v560
    %v785 = vpack.c.b16 %v569, %v565
    %v786 = vpack.c.b16 %v570, %v566
    %v787 = vpack.c.b16 %v571, %v567
    %v788 = vpack.c.b16 %v572, %v568
    %v789 = vpack.c.b16 %v577, %v573
    %v790 = vpack.c.b16 %v578, %v574
    %v791 = vpack.c.b16 %v579, %v575
    %v792 = vpack.c.b16 %v580, %v576
    %v793 = vpack.c.b16 %v585, %v581
    %v794 = vpack.c.b16 %v586, %v582
    %v795 = vpack.c.b16 %v587, %v583
    %v796 = vpack.c.b16 %v588, %v584
    %v797 = vpack.c.b16 %v593, %v589
    %v798 = vpack.c.b16 %v594, %v590
    %v799 = vpack.c.b16 %v595, %v591
    %v800 = vpack.c.b16 %v596, %v592
    %v801 = vpack.c.b16 %v601, %v597
    %v802 = vpack.c.b16 %v602, %v598
    %v803 = vpack.c.b16 %v603, %v599
    %v804 = vpack.c.b16 %v604, %v600
    %v805 = vpack.c.b16 %v609, %v605
    %v806 = vpack.c.b16 %v610, %v606
    %v807 = vpack.c.b16 %v611, %v607
    %v808 = vpack.c.b16 %v612, %v608
    %v809 = vpack.c.b16 %v617, %v613
    %v810 = vpack.c.b16 %v618, %v614
    %v811 = vpack.c.b16 %v619, %v615
    %v812 = vpack.c.b16 %v620, %v616
    %v813 = vpack.c.b16 %v625, %v621
    %v814 = vpack.c.b16 %v626, %v622
    %v815 = vpack.c.b16 %v627, %v623
    %v816 = vpack.c.b16 %v628, %v624
    %v817 = vpack.c.b16 %v633, %v629
    %v818 = vpack.c.b16 %v634, %v630
    %v819 = vpack.c.b16 %v635, %v631
    %v820 = vpack.c.b16 %v636, %v632
    %v821 = vpack.c.b16 %v641, %v637
    %v822 = vpack.c.b16 %v642, %v638
    %v823 = vpack.c.b16 %v643, %v639
    %v824 = vpack.c.b16 %v644, %v640
    %v825 = vpack.c.b16 %v649, %v645
    %v826 = vpack.c.b16 %v650, %v646
    %v827 = vpack.c.b16 %v651, %v647
    %v828 = vpack.c.b16 %v652, %v648
    %v829 = vpack.c.b16 %v657, %v653
    %v830 = vpack.c.b16 %v658, %v654
    %v831 = vpack.c.b16 %v659, %v655
    %v832 = vpack.c.b16 %v660, %v656
    %v833 = vpack.c.b16 %v665, %v661
    %v834 = vpack.c.b16 %v666, %v662
    %v835 = vpack.c.b16 %v667, %v663
    %v836 = vpack.c.b16 %v668, %v664
    %v837 = vpack.c.b16 %v673, %v669
    %v838 = vpack.c.b16 %v674, %v670
    %v839 = vpack.c.b16 %v675, %v671
    %v840 = vpack.c.b16 %v676, %v672
    %v841 = vpack.c.b16 %v681, %v677
    %v842 = vpack.c.b16 %v682, %v678
    %v843 = vpack.c.b16 %v683, %v679
    %v844 = vpack.c.b16 %v684, %v680
    %v845 = vpack.c.b16 %v689, %v685
    %v846 = vpack.c.b16 %v690, %v686
    %v847 = vpack.c.b16 %v691, %v687
    %v848 = vpack.c.b16 %v692, %v688
    %v849 = vpack.c.b16 %v697, %v693
    %v850 = vpack.c.b16 %v698, %v694
    %v851 = vpack.c.b16 %v699, %v695
    %v852 = vpack.c.b16 %v700, %v696
    %v853 = vpack.c.b16 %v705, %v701
    %v854 = vpack.c.b16 %v706, %v702
    %v855 = vpack.c.b16 %v707, %v703
    %v856 = vpack.c.b16 %v708, %v704
    %v857 = vpack.c.b16 %v713, %v709
    %v858 = vpack.c.b16 %v714, %v710
    %v859 = vpack.c.b16 %v715, %v711
    %v860 = vpack.c.b16 %v716, %v712
    %v861 = vpack.c.b16 %v721, %v717
    %v862 = vpack.c.b16 %v722, %v718
    %v863 = vpack.c.b16 %v723, %v719
    %v864 = vpack.c.b16 %v724, %v720
    %v865 = vpack.c.b16 %v729, %v725
    %v866 = vpack.c.b16 %v730, %v726
    %v867 = vpack.c.b16 %v731, %v727
    %v868 = vpack.c.b16 %v732, %v728
    %v869 = vpack.c.b16 %v737, %v733
    %v870 = vpack.c.b16 %v738, %v734
    %v871 = vpack.c.b16 %v739, %v735
    %v872 = vpack.c.b16 %v740, %v736
    %v873 = vpack.c.b16 %v745, %v741
    %v874 = vpack.c.b16 %v746, %v742
    %v875 = vpack.c.b16 %v747, %v743
    %v876 = vpack.c.b16 %v748, %v744
    %1005 = vmatpush.bf16.msra.mxu0 %v777
    %1006 = vmatpush.bf16.msra.mxu0 %v773
    %1007 = vmatpush.bf16.msra.mxu0 %v769
    %1008 = vmatpush.bf16.msra.mxu0 %v765
    %1009 = vmatpush.bf16.msra.mxu0 %v761
    %1010 = vmatpush.bf16.msra.mxu0 %v757
    %1011 = vmatpush.bf16.msra.mxu0 %v753
    %1012 = vmatpush.bf16.msra.mxu0 %v749
    %1013 = vmatmul.bf16.gmra.mxu0 %v223
    %v1014 = vpop.f32.mrf.mxu0
    %v1015 = vadd.f32 %v357, %v1014
    %v1016 = vpop.f32.mrf.mxu0
    %1017 = vdwg.mxu0
    %1018 = vmatpush.bf16.msra.mxu0 %v809
    %1019 = vmatpush.bf16.msra.mxu0 %v805
    %1020 = vmatpush.bf16.msra.mxu0 %v801
    %1021 = vmatpush.bf16.msra.mxu0 %v797
    %1022 = vmatpush.bf16.msra.mxu0 %v793
    %1023 = vmatpush.bf16.msra.mxu0 %v789
    %1024 = vmatpush.bf16.msra.mxu0 %v785
    %1025 = vmatpush.bf16.msra.mxu0 %v781
    %1026 = vmatmul.bf16.gmra.mxu0 %v224
    %v1027 = vpop.f32.mrf.mxu0
    %v1028 = vadd.f32 %v1015, %v1027
    %v1029 = vpop.f32.mrf.mxu0
    %1030 = vdwg.mxu0
    %1031 = vmatpush.bf16.msra.mxu0 %v841
    %1032 = vmatpush.bf16.msra.mxu0 %v837
    %1033 = vmatpush.bf16.msra.mxu0 %v833
    %1034 = vmatpush.bf16.msra.mxu0 %v829
    %1035 = vmatpush.bf16.msra.mxu0 %v825
    %1036 = vmatpush.bf16.msra.mxu0 %v821
    %1037 = vmatpush.bf16.msra.mxu0 %v817
    %1038 = vmatpush.bf16.msra.mxu0 %v813
    %1039 = vmatmul.bf16.gmra.mxu0 %v225
    %v1040 = vpop.f32.mrf.mxu0
    %v1041 = vadd.f32 %v1028, %v1040
    %v1042 = vpop.f32.mrf.mxu0
    %1043 = vdwg.mxu0
    %1044 = vmatpush.bf16.msra.mxu0 %v873
    %1045 = vmatpush.bf16.msra.mxu0 %v869
    %1046 = vmatpush.bf16.msra.mxu0 %v865
    %1047 = vmatpush.bf16.msra.mxu0 %v861
    %1048 = vmatpush.bf16.msra.mxu0 %v857
    %1049 = vmatpush.bf16.msra.mxu0 %v853
    %1050 = vmatpush.bf16.msra.mxu0 %v849
    %1051 = vmatpush.bf16.msra.mxu0 %v845
    %1052 = vmatmul.bf16.gmra.mxu0 %v226
    %v1053 = vpop.f32.mrf.mxu0
    %v1054 = vadd.f32 %v1041, %v1053
    %v1055 = vpop.f32.mrf.mxu0
    %1056 = vdwg.mxu0
    %1057 = vmatpush.bf16.msra.mxu0 %v778
    %1058 = vmatpush.bf16.msra.mxu0 %v774
    %1059 = vmatpush.bf16.msra.mxu0 %v770
    %1060 = vmatpush.bf16.msra.mxu0 %v766
    %1061 = vmatpush.bf16.msra.mxu0 %v762
    %1062 = vmatpush.bf16.msra.mxu0 %v758
    %1063 = vmatpush.bf16.msra.mxu0 %v754
    %1064 = vmatpush.bf16.msra.mxu0 %v750
    %1065 = vmatmul.bf16.gmra.mxu0 %v223
    %v1066 = vpop.f32.mrf.mxu0
    %v1067 = vadd.f32 %v358, %v1066
    %v1068 = vpop.f32.mrf.mxu0
    %1069 = vdwg.mxu0
    %1070 = vmatpush.bf16.msra.mxu0 %v810
    %1071 = vmatpush.bf16.msra.mxu0 %v806
    %1072 = vmatpush.bf16.msra.mxu0 %v802
    %1073 = vmatpush.bf16.msra.mxu0 %v798
    %1074 = vmatpush.bf16.msra.mxu0 %v794
    %1075 = vmatpush.bf16.msra.mxu0 %v790
    %1076 = vmatpush.bf16.msra.mxu0 %v786
    %1077 = vmatpush.bf16.msra.mxu0 %v782
    %1078 = vmatmul.bf16.gmra.mxu0 %v224
    %v1079 = vpop.f32.mrf.mxu0
    %v1080 = vadd.f32 %v1067, %v1079
    %v1081 = vpop.f32.mrf.mxu0
    %1082 = vdwg.mxu0
    %1083 = vmatpush.bf16.msra.mxu0 %v842
    %1084 = vmatpush.bf16.msra.mxu0 %v838
    %1085 = vmatpush.bf16.msra.mxu0 %v834
    %1086 = vmatpush.bf16.msra.mxu0 %v830
    %1087 = vmatpush.bf16.msra.mxu0 %v826
    %1088 = vmatpush.bf16.msra.mxu0 %v822
    %1089 = vmatpush.bf16.msra.mxu0 %v818
    %1090 = vmatpush.bf16.msra.mxu0 %v814
    %1091 = vmatmul.bf16.gmra.mxu0 %v225
    %v1092 = vpop.f32.mrf.mxu0
    %v1093 = vadd.f32 %v1080, %v1092
    %v1094 = vpop.f32.mrf.mxu0
    %1095 = vdwg.mxu0
    %1096 = vmatpush.bf16.msra.mxu0 %v874
    %1097 = vmatpush.bf16.msra.mxu0 %v870
    %1098 = vmatpush.bf16.msra.mxu0 %v866
    %1099 = vmatpush.bf16.msra.mxu0 %v862
    %1100 = vmatpush.bf16.msra.mxu0 %v858
    %1101 = vmatpush.bf16.msra.mxu0 %v854
    %1102 = vmatpush.bf16.msra.mxu0 %v850
    %1103 = vmatpush.bf16.msra.mxu0 %v846
    %1104 = vmatmul.bf16.gmra.mxu0 %v226
    %v1105 = vpop.f32.mrf.mxu0
    %v1106 = vadd.f32 %v1093, %v1105
    %v1107 = vpop.f32.mrf.mxu0
    %1108 = vdwg.mxu0
    %1109 = vmatpush.bf16.msra.mxu0 %v779
    %1110 = vmatpush.bf16.msra.mxu0 %v775
    %1111 = vmatpush.bf16.msra.mxu0 %v771
    %1112 = vmatpush.bf16.msra.mxu0 %v767
    %1113 = vmatpush.bf16.msra.mxu0 %v763
    %1114 = vmatpush.bf16.msra.mxu0 %v759
    %1115 = vmatpush.bf16.msra.mxu0 %v755
    %1116 = vmatpush.bf16.msra.mxu0 %v751
    %1117 = vmatmul.bf16.gmra.mxu0 %v223
    %v1118 = vpop.f32.mrf.mxu0
    %v1119 = vadd.f32 %v359, %v1118
    %v1120 = vpop.f32.mrf.mxu0
    %1121 = vdwg.mxu0
    %1122 = vmatpush.bf16.msra.mxu0 %v811
    %1123 = vmatpush.bf16.msra.mxu0 %v807
    %1124 = vmatpush.bf16.msra.mxu0 %v803
    %1125 = vmatpush.bf16.msra.mxu0 %v799
    %1126 = vmatpush.bf16.msra.mxu0 %v795
    %1127 = vmatpush.bf16.msra.mxu0 %v791
    %1128 = vmatpush.bf16.msra.mxu0 %v787
    %1129 = vmatpush.bf16.msra.mxu0 %v783
    %1130 = vmatmul.bf16.gmra.mxu0 %v224
    %v1131 = vpop.f32.mrf.mxu0
    %v1132 = vadd.f32 %v1119, %v1131
    %v1133 = vpop.f32.mrf.mxu0
    %1134 = vdwg.mxu0
    %1135 = vmatpush.bf16.msra.mxu0 %v843
    %1136 = vmatpush.bf16.msra.mxu0 %v839
    %1137 = vmatpush.bf16.msra.mxu0 %v835
    %1138 = vmatpush.bf16.msra.mxu0 %v831
    %1139 = vmatpush.bf16.msra.mxu0 %v827
    %1140 = vmatpush.bf16.msra.mxu0 %v823
    %1141 = vmatpush.bf16.msra.mxu0 %v819
    %1142 = vmatpush.bf16.msra.mxu0 %v815
    %1143 = vmatmul.bf16.gmra.mxu0 %v225
    %v1144 = vpop.f32.mrf.mxu0
    %v1145 = vadd.f32 %v1132, %v1144
    %v1146 = vpop.f32.mrf.mxu0
    %1147 = vdwg.mxu0
    %1148 = vmatpush.bf16.msra.mxu0 %v875
    %1149 = vmatpush.bf16.msra.mxu0 %v871
    %1150 = vmatpush.bf16.msra.mxu0 %v867
    %1151 = vmatpush.bf16.msra.mxu0 %v863
    %1152 = vmatpush.bf16.msra.mxu0 %v859
    %1153 = vmatpush.bf16.msra.mxu0 %v855
    %1154 = vmatpush.bf16.msra.mxu0 %v851
    %1155 = vmatpush.bf16.msra.mxu0 %v847
    %1156 = vmatmul.bf16.gmra.mxu0 %v226
    %v1157 = vpop.f32.mrf.mxu0
    %v1158 = vadd.f32 %v1145, %v1157
    %v1159 = vpop.f32.mrf.mxu0
    %1160 = vdwg.mxu0
    %1161 = vmatpush.bf16.msra.mxu0 %v780
    %1162 = vmatpush.bf16.msra.mxu0 %v776
    %1163 = vmatpush.bf16.msra.mxu0 %v772
    %1164 = vmatpush.bf16.msra.mxu0 %v768
    %1165 = vmatpush.bf16.msra.mxu0 %v764
    %1166 = vmatpush.bf16.msra.mxu0 %v760
    %1167 = vmatpush.bf16.msra.mxu0 %v756
    %1168 = vmatpush.bf16.msra.mxu0 %v752
    %1169 = vmatmul.bf16.gmra.mxu0 %v223
    %v1170 = vpop.f32.mrf.mxu0
    %v1171 = vadd.f32 %v360, %v1170
    %v1172 = vpop.f32.mrf.mxu0
    %1173 = vdwg.mxu0
    %1174 = vmatpush.bf16.msra.mxu0 %v812
    %1175 = vmatpush.bf16.msra.mxu0 %v808
    %1176 = vmatpush.bf16.msra.mxu0 %v804
    %1177 = vmatpush.bf16.msra.mxu0 %v800
    %1178 = vmatpush.bf16.msra.mxu0 %v796
    %1179 = vmatpush.bf16.msra.mxu0 %v792
    %1180 = vmatpush.bf16.msra.mxu0 %v788
    %1181 = vmatpush.bf16.msra.mxu0 %v784
    %1182 = vmatmul.bf16.gmra.mxu0 %v224
    %v1183 = vpop.f32.mrf.mxu0
    %v1184 = vadd.f32 %v1171, %v1183
    %v1185 = vpop.f32.mrf.mxu0
    %1186 = vdwg.mxu0
    %1187 = vmatpush.bf16.msra.mxu0 %v844
    %1188 = vmatpush.bf16.msra.mxu0 %v840
    %1189 = vmatpush.bf16.msra.mxu0 %v836
    %1190 = vmatpush.bf16.msra.mxu0 %v832
    %1191 = vmatpush.bf16.msra.mxu0 %v828
    %1192 = vmatpush.bf16.msra.mxu0 %v824
    %1193 = vmatpush.bf16.msra.mxu0 %v820
    %1194 = vmatpush.bf16.msra.mxu0 %v816
    %1195 = vmatmul.bf16.gmra.mxu0 %v225
    %v1196 = vpop.f32.mrf.mxu0
    %v1197 = vadd.f32 %v1184, %v1196
    %v1198 = vpop.f32.mrf.mxu0
    %1199 = vdwg.mxu0
    %1200 = vmatpush.bf16.msra.mxu0 %v876
    %1201 = vmatpush.bf16.msra.mxu0 %v872
    %1202 = vmatpush.bf16.msra.mxu0 %v868
    %1203 = vmatpush.bf16.msra.mxu0 %v864
    %1204 = vmatpush.bf16.msra.mxu0 %v860
    %1205 = vmatpush.bf16.msra.mxu0 %v856
    %1206 = vmatpush.bf16.msra.mxu0 %v852
    %1207 = vmatpush.bf16.msra.mxu0 %v848
    %1208 = vmatmul.bf16.gmra.mxu0 %v226
    %v1209 = vpop.f32.mrf.mxu0
    %v1210 = vadd.f32 %v1197, %v1209
    %v1211 = vpop.f32.mrf.mxu0
    %1212 = vdwg.mxu0
    %v1213 = vmax.f32 %v1054, 0.0
    %v1214 = vmax.f32 %v1106, 0.0
    %v1215 = vmax.f32 %v1158, 0.0
    %v1216 = vmax.f32 %v1210, 0.0
    %v1217 = vpack.c.bf16 %v1213, %v1213
    %v1218 = vpack.c.bf16 %v1214, %v1214
    %v1219 = vpack.c.bf16 %v1215, %v1215
    %v1220 = vpack.c.bf16 %v1216, %v1216
    %v1221 = vld [vmem:[%s5] sm:$0xf]
    %v1222 = vld [vmem:[%s5 + $0x4] sm:$0xf]
    %v1223 = vld [vmem:[%s5 + $0x8] sm:$0xf]
    %v1224 = vld [vmem:[%s5 + $0xc] sm:$0xf]
    %v1225 = vld [vmem:[%s5 + $0x10] sm:$0xf]
    %v1226 = vld [vmem:[%s5 + $0x14] sm:$0xf]
    %v1227 = vld [vmem:[%s5 + $0x18] sm:$0xf]
    %v1228 = vld [vmem:[%s5 + $0x1c] sm:$0xf]
    %v1229 = vld [vmem:[%s5 + $0x20] sm:$0xf]
    %v1230 = vld [vmem:[%s5 + $0x24] sm:$0xf]
    %v1231 = vld [vmem:[%s5 + $0x28] sm:$0xf]
    %v1232 = vld [vmem:[%s5 + $0x2c] sm:$0xf]
    %v1233 = vld [vmem:[%s5 + $0x30] sm:$0xf]
    %v1234 = vld [vmem:[%s5 + $0x34] sm:$0xf]
    %v1235 = vld [vmem:[%s5 + $0x38] sm:$0xf]
    %v1236 = vld [vmem:[%s5 + $0x3c] sm:$0xf]
    %v1237 = vld [vmem:[%s5 + $0x40] sm:$0xf]
    %v1238 = vld [vmem:[%s5 + $0x44] sm:$0xf]
    %v1239 = vld [vmem:[%s5 + $0x48] sm:$0xf]
    %v1240 = vld [vmem:[%s5 + $0x4c] sm:$0xf]
    %v1241 = vld [vmem:[%s5 + $0x50] sm:$0xf]
    %v1242 = vld [vmem:[%s5 + $0x54] sm:$0xf]
    %v1243 = vld [vmem:[%s5 + $0x58] sm:$0xf]
    %v1244 = vld [vmem:[%s5 + $0x5c] sm:$0xf]
    %v1245 = vld [vmem:[%s5 + $0x60] sm:$0xf]
    %v1246 = vld [vmem:[%s5 + $0x64] sm:$0xf]
    %v1247 = vld [vmem:[%s5 + $0x68] sm:$0xf]
    %v1248 = vld [vmem:[%s5 + $0x6c] sm:$0xf]
    %v1249 = vld [vmem:[%s5 + $0x70] sm:$0xf]
    %v1250 = vld [vmem:[%s5 + $0x74] sm:$0xf]
    %v1251 = vld [vmem:[%s5 + $0x78] sm:$0xf]
    %v1252 = vld [vmem:[%s5 + $0x7c] sm:$0xf]
    %v1253 = vld [vmem:[%s5 + $0x80] sm:$0xf]
    %v1254 = vld [vmem:[%s5 + $0x84] sm:$0xf]
    %v1255 = vld [vmem:[%s5 + $0x88] sm:$0xf]
    %v1256 = vld [vmem:[%s5 + $0x8c] sm:$0xf]
    %v1257 = vld [vmem:[%s5 + $0x90] sm:$0xf]
    %v1258 = vld [vmem:[%s5 + $0x94] sm:$0xf]
    %v1259 = vld [vmem:[%s5 + $0x98] sm:$0xf]
    %v1260 = vld [vmem:[%s5 + $0x9c] sm:$0xf]
    %v1261 = vld [vmem:[%s5 + $0xa0] sm:$0xf]
    %v1262 = vld [vmem:[%s5 + $0xa4] sm:$0xf]
    %v1263 = vld [vmem:[%s5 + $0xa8] sm:$0xf]
    %v1264 = vld [vmem:[%s5 + $0xac] sm:$0xf]
    %v1265 = vld [vmem:[%s5 + $0xb0] sm:$0xf]
    %v1266 = vld [vmem:[%s5 + $0xb4] sm:$0xf]
    %v1267 = vld [vmem:[%s5 + $0xb8] sm:$0xf]
    %v1268 = vld [vmem:[%s5 + $0xbc] sm:$0xf]
    %v1269 = vld [vmem:[%s5 + $0xc0] sm:$0xf]
    %v1270 = vld [vmem:[%s5 + $0xc4] sm:$0xf]
    %v1271 = vld [vmem:[%s5 + $0xc8] sm:$0xf]
    %v1272 = vld [vmem:[%s5 + $0xcc] sm:$0xf]
    %v1273 = vld [vmem:[%s5 + $0xd0] sm:$0xf]
    %v1274 = vld [vmem:[%s5 + $0xd4] sm:$0xf]
    %v1275 = vld [vmem:[%s5 + $0xd8] sm:$0xf]
    %v1276 = vld [vmem:[%s5 + $0xdc] sm:$0xf]
    %v1277 = vld [vmem:[%s5 + $0xe0] sm:$0xf]
    %v1278 = vld [vmem:[%s5 + $0xe4] sm:$0xf]
    %v1279 = vld [vmem:[%s5 + $0xe8] sm:$0xf]
    %v1280 = vld [vmem:[%s5 + $0xec] sm:$0xf]
    %v1281 = vld [vmem:[%s5 + $0xf0] sm:$0xf]
    %v1282 = vld [vmem:[%s5 + $0xf4] sm:$0xf]
    %v1283 = vld [vmem:[%s5 + $0xf8] sm:$0xf]
    %v1284 = vld [vmem:[%s5 + $0xfc] sm:$0xf]
    %v1285 = vld [vmem:[%s6] sm:$0x1]
    %v1287 = vperm.slane %v1285, 0
    %v1353 = vunpack.c.l.b16 %v1221
    %v1354 = vunpack.c.l.b16 %v1222
    %v1355 = vunpack.c.l.b16 %v1223
    %v1356 = vunpack.c.l.b16 %v1224
    %v1357 = vunpack.c.l.b16 %v1225
    %v1358 = vunpack.c.l.b16 %v1226
    %v1359 = vunpack.c.l.b16 %v1227
    %v1360 = vunpack.c.l.b16 %v1228
    %v1361 = vunpack.c.l.b16 %v1229
    %v1362 = vunpack.c.l.b16 %v1230
    %v1363 = vunpack.c.l.b16 %v1231
    %v1364 = vunpack.c.l.b16 %v1232
    %v1365 = vunpack.c.l.b16 %v1233
    %v1366 = vunpack.c.l.b16 %v1234
    %v1367 = vunpack.c.l.b16 %v1235
    %v1368 = vunpack.c.l.b16 %v1236
    %v1369 = vunpack.c.l.b16 %v1237
    %v1370 = vunpack.c.l.b16 %v1238
    %v1371 = vunpack.c.l.b16 %v1239
    %v1372 = vunpack.c.l.b16 %v1240
    %v1373 = vunpack.c.l.b16 %v1241
    %v1374 = vunpack.c.l.b16 %v1242
    %v1375 = vunpack.c.l.b16 %v1243
    %v1376 = vunpack.c.l.b16 %v1244
    %v1377 = vunpack.c.l.b16 %v1245
    %v1378 = vunpack.c.l.b16 %v1246
    %v1379 = vunpack.c.l.b16 %v1247
    %v1380 = vunpack.c.l.b16 %v1248
    %v1381 = vunpack.c.l.b16 %v1249
    %v1382 = vunpack.c.l.b16 %v1250
    %v1383 = vunpack.c.l.b16 %v1251
    %v1384 = vunpack.c.l.b16 %v1252
    %v1385 = vunpack.c.l.b16 %v1253
    %v1386 = vunpack.c.l.b16 %v1254
    %v1387 = vunpack.c.l.b16 %v1255
    %v1388 = vunpack.c.l.b16 %v1256
    %v1389 = vunpack.c.l.b16 %v1257
    %v1390 = vunpack.c.l.b16 %v1258
    %v1391 = vunpack.c.l.b16 %v1259
    %v1392 = vunpack.c.l.b16 %v1260
    %v1393 = vunpack.c.l.b16 %v1261
    %v1394 = vunpack.c.l.b16 %v1262
    %v1395 = vunpack.c.l.b16 %v1263
    %v1396 = vunpack.c.l.b16 %v1264
    %v1397 = vunpack.c.l.b16 %v1265
    %v1398 = vunpack.c.l.b16 %v1266
    %v1399 = vunpack.c.l.b16 %v1267
    %v1400 = vunpack.c.l.b16 %v1268
    %v1401 = vunpack.c.l.b16 %v1269
    %v1402 = vunpack.c.l.b16 %v1270
    %v1403 = vunpack.c.l.b16 %v1271
    %v1404 = vunpack.c.l.b16 %v1272
    %v1405 = vunpack.c.l.b16 %v1273
    %v1406 = vunpack.c.l.b16 %v1274
    %v1407 = vunpack.c.l.b16 %v1275
    %v1408 = vunpack.c.l.b16 %v1276
    %v1409 = vunpack.c.l.b16 %v1277
    %v1410 = vunpack.c.l.b16 %v1278
    %v1411 = vunpack.c.l.b16 %v1279
    %v1412 = vunpack.c.l.b16 %v1280
    %v1413 = vunpack.c.l.b16 %v1281
    %v1414 = vunpack.c.l.b16 %v1282
    %v1415 = vunpack.c.l.b16 %v1283
    %v1416 = vunpack.c.l.b16 %v1284
    %v1417 = vpack.c.b16 %v1354, %v1353
    %v1418 = vpack.c.b16 %v1356, %v1355
    %v1419 = vpack.c.b16 %v1358, %v1357
    %v1420 = vpack.c.b16 %v1360, %v1359
    %v1421 = vpack.c.b16 %v1362, %v1361
    %v1422 = vpack.c.b16 %v1364, %v1363
    %v1423 = vpack.c.b16 %v1366, %v1365
    %v1424 = vpack.c.b16 %v1368, %v1367
    %v1425 = vpack.c.b16 %v1370, %v1369
    %v1426 = vpack.c.b16 %v1372, %v1371
    %v1427 = vpack.c.b16 %v1374, %v1373
    %v1428 = vpack.c.b16 %v1376, %v1375
    %v1429 = vpack.c.b16 %v1378, %v1377
    %v1430 = vpack.c.b16 %v1380, %v1379
    %v1431 = vpack.c.b16 %v1382, %v1381
    %v1432 = vpack.c.b16 %v1384, %v1383
    %v1433 = vpack.c.b16 %v1386, %v1385
    %v1434 = vpack.c.b16 %v1388, %v1387
    %v1435 = vpack.c.b16 %v1390, %v1389
    %v1436 = vpack.c.b16 %v1392, %v1391
    %v1437 = vpack.c.b16 %v1394, %v1393
    %v1438 = vpack.c.b16 %v1396, %v1395
    %v1439 = vpack.c.b16 %v1398, %v1397
    %v1440 = vpack.c.b16 %v1400, %v1399
    %v1441 = vpack.c.b16 %v1402, %v1401
    %v1442 = vpack.c.b16 %v1404, %v1403
    %v1443 = vpack.c.b16 %v1406, %v1405
    %v1444 = vpack.c.b16 %v1408, %v1407
    %v1445 = vpack.c.b16 %v1410, %v1409
    %v1446 = vpack.c.b16 %v1412, %v1411
    %v1447 = vpack.c.b16 %v1414, %v1413
    %v1448 = vpack.c.b16 %v1416, %v1415
    %1481 = vmatpush.bf16.msra.mxu0 %v1424
    %1482 = vmatpush.bf16.msra.mxu0 %v1423
    %1483 = vmatpush.bf16.msra.mxu0 %v1422
    %1484 = vmatpush.bf16.msra.mxu0 %v1421
    %1485 = vmatpush.bf16.msra.mxu0 %v1420
    %1486 = vmatpush.bf16.msra.mxu0 %v1419
    %1487 = vmatpush.bf16.msra.mxu0 %v1418
    %1488 = vmatpush.bf16.msra.mxu0 %v1417
    %1489 = vmatmul.bf16.gmra.mxu0 %v1217
    %v1490 = vpop.f32.mrf.mxu0
    %v1491 = vadd.f32 %v1287, %v1490
    %v1492 = vpop.f32.mrf.mxu0
    %1493 = vdwg.mxu0
    %1494 = vmatpush.bf16.msra.mxu0 %v1432
    %1495 = vmatpush.bf16.msra.mxu0 %v1431
    %1496 = vmatpush.bf16.msra.mxu0 %v1430
    %1497 = vmatpush.bf16.msra.mxu0 %v1429
    %1498 = vmatpush.bf16.msra.mxu0 %v1428
    %1499 = vmatpush.bf16.msra.mxu0 %v1427
    %1500 = vmatpush.bf16.msra.mxu0 %v1426
    %1501 = vmatpush.bf16.msra.mxu0 %v1425
    %1502 = vmatmul.bf16.gmra.mxu0 %v1218
    %v1503 = vpop.f32.mrf.mxu0
    %v1504 = vadd.f32 %v1491, %v1503
    %v1505 = vpop.f32.mrf.mxu0
    %1506 = vdwg.mxu0
    %1507 = vmatpush.bf16.msra.mxu0 %v1440
    %1508 = vmatpush.bf16.msra.mxu0 %v1439
    %1509 = vmatpush.bf16.msra.mxu0 %v1438
    %1510 = vmatpush.bf16.msra.mxu0 %v1437
    %1511 = vmatpush.bf16.msra.mxu0 %v1436
    %1512 = vmatpush.bf16.msra.mxu0 %v1435
    %1513 = vmatpush.bf16.msra.mxu0 %v1434
    %1514 = vmatpush.bf16.msra.mxu0 %v1433
    %1515 = vmatmul.bf16.gmra.mxu0 %v1219
    %v1516 = vpop.f32.mrf.mxu0
    %v1517 = vadd.f32 %v1504, %v1516
    %v1518 = vpop.f32.mrf.mxu0
    %1519 = vdwg.mxu0
    %1520 = vmatpush.bf16.msra.mxu0 %v1448
    %1521 = vmatpush.bf16.msra.mxu0 %v1447
    %1522 = vmatpush.bf16.msra.mxu0 %v1446
    %1523 = vmatpush.bf16.msra.mxu0 %v1445
    %1524 = vmatpush.bf16.msra.mxu0 %v1444
    %1525 = vmatpush.bf16.msra.mxu0 %v1443
    %1526 = vmatpush.bf16.msra.mxu0 %v1442
    %1527 = vmatpush.bf16.msra.mxu0 %v1441
    %1528 = vmatmul.bf16.gmra.mxu0 %v1220
    %v1529 = vpop.f32.mrf.mxu0
    %v1530 = vadd.f32 %v1517, %v1529
    %v1531 = vpop.f32.mrf.mxu0
    %1532 = vdwg.mxu0
    %vm1533 = vcmask 23552
    %1534 = vst.msk [vmem:[%s7] sm:$0xff] %vm1533, %v1530
    // Predicated region
    $region34: #{ann_forward.1} parent=1 // pred_check
      _
    $region35: #{ann_forward.1} parent=1 // pred_check_branch
      %1536 = sbr.rel (0) target = $region37
    $region36: #{ann_forward.1} parent=1 // pred_region
      _
    $region37: #{ann_forward.1} parent=1 // pred_fallthru
      _
    // Predicated region
    $region38: #{ann_forward.1} parent=1 // pred_check
      _
    $region39: #{ann_forward.1} parent=1 // pred_check_branch
      %1538 = sbr.rel (0) target = $region41
    $region40: #{ann_forward.1} parent=1 // pred_region
      _
    $region41: #{ann_forward.1} parent=1 // pred_fallthru
      _
    %1539 = vsyncpa [#allocation3], 1

</llo_original>
